<compile_context>
chip_gen: v5e
topology: v5e:2x2
jax: 0.10.0
libtpu: 0.0.40
codegen_flags: <defaults>
</compile_context>

<pallas_src>
import functools

import jax
import jax.numpy as jnp
from jax.experimental import pallas as pl
from jax.experimental.pallas import tpu as pltpu


# ----------------------------------------------------------------------------
# Fused Pallas kernel
# ----------------------------------------------------------------------------
def _lstm_gate_combine(gates, c_prev, hidden_size):
    """PyTorch LSTMCell combine. gates: (B, 4H) pre-activation, order i,f,g,o."""
    H = hidden_size
    # Full-width transcendentals (EUP), then static lane extraction.
    sig = jax.nn.sigmoid(gates)
    tnh = jnp.tanh(gates)
    i_g = sig[:, 0 * H:1 * H]
    f_g = sig[:, 1 * H:2 * H]
    g_g = tnh[:, 2 * H:3 * H]
    o_g = sig[:, 3 * H:4 * H]
    c_new = f_g * c_prev + i_g * g_g
    h_new = o_g * jnp.tanh(c_new)
    return h_new, c_new


def _fused_kernel(*refs, num_steps, batch, hidden_sizes, num_layers):
    """refs = [x_flat, (w_ih_t, w_hh_t, b) * L, drop_mask, cls_w_t, cls_b, out].

    x_flat: (num_steps*B, In) time-major flattened input window.
    """
    x_ref = refs[0]
    layer_refs = refs[1:1 + 3 * num_layers]
    mask_ref = refs[1 + 3 * num_layers]
    cw_ref = refs[2 + 3 * num_layers]
    cb_ref = refs[3 + 3 * num_layers]
    out_ref = refs[4 + 3 * num_layers]

    B = batch

    # Load all weights into vregs / VMEM values exactly once.
    wihs = [layer_refs[3 * l][...] for l in range(num_layers)]
    whhs = [layer_refs[3 * l + 1][...] for l in range(num_layers)]
    b_rows = [layer_refs[3 * l + 2][...] for l in range(num_layers)]  # (1, 4H_l)
    # Hoist invariant bias broadcasts out of the unrolled time loop (layers >= 1).
    b_full = [jnp.broadcast_to(b_rows[l], (B, 4 * hidden_sizes[l]))
              for l in range(1, num_layers)]

    # Prologue: layer-0 input projection for ALL timesteps in one MXU call.
    x_all = x_ref[...]                                             # (T*B, In)
    xproj0 = (jnp.dot(x_all, wihs[0], preferred_element_type=jnp.float32)
              + b_rows[0])                                         # (T*B, 4H0)

    # Recurrent state lives purely in vregs (loops fully unrolled at trace time).
    hs = [jnp.zeros((B, h), jnp.float32) for h in hidden_sizes]
    cs = [jnp.zeros((B, h), jnp.float32) for h in hidden_sizes]

    x = None
    for t in range(num_steps):                       # unrolled
        # Layer 0: input projection already computed; only h @ W_hh is serial.
        gates0 = (xproj0[t * B:(t + 1) * B, :]
                  + jnp.dot(hs[0], whhs[0], preferred_element_type=jnp.float32))
        hs[0], cs[0] = _lstm_gate_combine(gates0, cs[0], hidden_sizes[0])
        x = hs[0]
        for l in range(1, num_layers):               # unrolled
            gates = (jnp.dot(x, wihs[l], preferred_element_type=jnp.float32)
                     + jnp.dot(hs[l], whhs[l], preferred_element_type=jnp.float32)
                     + b_full[l - 1])
            hs[l], cs[l] = _lstm_gate_combine(gates, cs[l], hidden_sizes[l])
            x = hs[l]

    # Epilogue: inverted dropout (precomputed scaled mask) + linear classifier.
    xd = x * mask_ref[...]
    out_ref[...] = (jnp.dot(xd, cw_ref[...], preferred_element_type=jnp.float32)
                    + cb_ref[...])


# ----------------------------------------------------------------------------
# Host wrapper (layout plumbing only; all compute inside the single kernel)
# ----------------------------------------------------------------------------
def stacked_lstm_one_forward(xs, params, num_steps, dropout_key,
                             drop_p=0.5, training=True):
    B, S, In = xs.shape
    lstm_params = params["lstm"]
    num_layers = len(lstm_params)
    hidden_sizes = tuple(int(lp["w_hh_t"].shape[0]) for lp in lstm_params)
    H_last = hidden_sizes[-1]
    C = params["cls_w_t"].shape[1]

    # Time window matching xs[:, -num_steps - 9 + t, :] for t in range(num_steps).
    start = S - num_steps - 9
    xw = jax.lax.dynamic_slice_in_dim(xs, start, num_steps, axis=1)  # (B, T, In)
    x_flat = jnp.transpose(xw, (1, 0, 2)).reshape(num_steps * B, In)  # (T*B, In)

    # Inverted dropout mask (F.dropout default: training=True, p=0.5).
    if training and drop_p > 0.0:
        keep = jax.random.bernoulli(dropout_key, 1.0 - drop_p, (B, H_last))
        mask = keep.astype(jnp.float32) / (1.0 - drop_p)
    else:
        mask = jnp.ones((B, H_last), jnp.float32)

    kernel = functools.partial(
        _fused_kernel, num_steps=num_steps, batch=B,
        hidden_sizes=hidden_sizes, num_layers=num_layers)

    inputs = [x_flat]
    for lp in lstm_params:
        inputs += [lp["w_ih_t"], lp["w_hh_t"], lp["b"]]
    inputs += [mask, params["cls_w_t"], params["cls_b"]]

    vmem = pl.BlockSpec(memory_space=pltpu.MemorySpace.VMEM)
    logits = pl.pallas_call(
        kernel,
        out_shape=jax.ShapeDtypeStruct((B, C), jnp.float32),
        in_specs=[vmem] * len(inputs),
        out_specs=vmem,
    )(*inputs)
    return logits


# ----------------------------------------------------------------------------
# Parameter init (mirrors nn.LSTMCell / nn.Linear shapes & init ranges)
# ----------------------------------------------------------------------------
def init_params(key, input_size, hidden_sizes, num_classes):
    cfg = [input_size, *hidden_sizes]
    lstm_params = []
    for in_sz, hid_sz in zip(cfg[:-1], cfg[1:]):
        key, k1, k2, k3, k4 = jax.random.split(key, 5)
        stdv = 1.0 / jnp.sqrt(hid_sz)
        w_ih = jax.random.uniform(k1, (4 * hid_sz, in_sz), jnp.float32, -stdv, stdv)
        w_hh = jax.random.uniform(k2, (4 * hid_sz, hid_sz), jnp.float32, -stdv, stdv)
        b_ih = jax.random.uniform(k3, (4 * hid_sz,), jnp.float32, -stdv, stdv)
        b_hh = jax.random.uniform(k4, (4 * hid_sz,), jnp.float32, -stdv, stdv)
        lstm_params.append({
            "w_ih_t": w_ih.T,                   # (in, 4H)
            "w_hh_t": w_hh.T,                   # (H, 4H)
            "b": (b_ih + b_hh)[None, :],        # (1, 4H)
        })
    key, k1, k2 = jax.random.split(key, 3)
    stdv = 1.0 / jnp.sqrt(hidden_sizes[-1])
    cls_w = jax.random.uniform(k1, (num_classes, hidden_sizes[-1]), jnp.float32,
                               -stdv, stdv)
    cls_b = jax.random.uniform(k2, (num_classes,), jnp.float32, -stdv, stdv)
    return {"lstm": lstm_params,
            "cls_w_t": cls_w.T,                 # (H_last, C)
            "cls_b": cls_b[None, :]}            # (1, C)


# ----------------------------------------------------------------------------
# Main
# ----------------------------------------------------------------------------
if __name__ == "__main__":
    input_size = 16
    hidden_sizes = [32, 32]
    num_classes = 10
    num_steps = 4
    batch = 8
    seq_len = 16          # must be >= num_steps + 9

    key = jax.random.PRNGKey(0)
    key, pkey, xkey, dkey = jax.random.split(key, 4)
    params = init_params(pkey, input_size, hidden_sizes, num_classes)
    xs = jax.random.normal(xkey, (batch, seq_len, input_size), jnp.float32)

    forward = jax.jit(stacked_lstm_one_forward,
                      static_argnames=("num_steps", "training"))
    logits = forward(xs, params, num_steps=num_steps, dropout_key=dkey)
    logits = jax.block_until_ready(logits)

    assert logits.shape == (batch, num_classes)
    assert bool(jnp.all(jnp.isfinite(logits)))
    print("KERNEL_OK")
</pallas_src>

<mosaic_0001>
module attributes {stable_mosaic.version = 11 : i64} {
  func.func @_fused_kernel(%arg0: memref<32x16xf32, #tpu.memory_space<vmem>>, %arg1: memref<16x128xf32, #tpu.memory_space<vmem>>, %arg2: memref<32x128xf32, #tpu.memory_space<vmem>>, %arg3: memref<1x128xf32, #tpu.memory_space<vmem>>, %arg4: memref<32x128xf32, #tpu.memory_space<vmem>>, %arg5: memref<32x128xf32, #tpu.memory_space<vmem>>, %arg6: memref<1x128xf32, #tpu.memory_space<vmem>>, %arg7: memref<8x32xf32, #tpu.memory_space<vmem>>, %arg8: memref<32x10xf32, #tpu.memory_space<vmem>>, %arg9: memref<1x10xf32, #tpu.memory_space<vmem>>, %arg10: memref<8x10xf32, #tpu.memory_space<vmem>>) attributes {dimension_semantics = [], scalar_prefetch = 0 : i64, scratch_operands = 0 : i64, tpu.core_type = #tpu.core_type<tc>} {
    %c0 = arith.constant 0 : index
    %c0_0 = arith.constant 0 : index
    %0 = vector.load %arg1[%c0, %c0_0] : memref<16x128xf32, #tpu.memory_space<vmem>>, vector<16x128xf32>
    %c0_1 = arith.constant 0 : index
    %c0_2 = arith.constant 0 : index
    %1 = vector.load %arg4[%c0_1, %c0_2] : memref<32x128xf32, #tpu.memory_space<vmem>>, vector<32x128xf32>
    %c0_3 = arith.constant 0 : index
    %c0_4 = arith.constant 0 : index
    %2 = vector.load %arg2[%c0_3, %c0_4] : memref<32x128xf32, #tpu.memory_space<vmem>>, vector<32x128xf32>
    %c0_5 = arith.constant 0 : index
    %c0_6 = arith.constant 0 : index
    %3 = vector.load %arg5[%c0_5, %c0_6] : memref<32x128xf32, #tpu.memory_space<vmem>>, vector<32x128xf32>
    %c0_7 = arith.constant 0 : index
    %c0_8 = arith.constant 0 : index
    %4 = vector.load %arg3[%c0_7, %c0_8] : memref<1x128xf32, #tpu.memory_space<vmem>>, vector<1x128xf32>
    %c0_9 = arith.constant 0 : index
    %c0_10 = arith.constant 0 : index
    %5 = vector.load %arg6[%c0_9, %c0_10] : memref<1x128xf32, #tpu.memory_space<vmem>>, vector<1x128xf32>
    %6 = vector.shape_cast %5 : vector<1x128xf32> to vector<1x128xf32>
    %7 = vector.broadcast %6 : vector<1x128xf32> to vector<8x128xf32>
    %c0_11 = arith.constant 0 : index
    %c0_12 = arith.constant 0 : index
    %8 = vector.load %arg0[%c0_11, %c0_12] : memref<32x16xf32, #tpu.memory_space<vmem>>, vector<32x16xf32>
    %cst = arith.constant dense<0.000000e+00> : vector<32x128xf32>
    %9 = tpu.matmul %8, %0, %cst {dimension_numbers = #tpu.dot_dimension_numbers<[1], [0], [0], [1], [0, 0, 1, 1], [], []>} : vector<32x16xf32>, vector<16x128xf32>, vector<32x128xf32> -> vector<32x128xf32>
    %10 = vector.broadcast %4 : vector<1x128xf32> to vector<32x128xf32>
    %11 = arith.addf %9, %10 : vector<32x128xf32>
    %cst_13 = arith.constant 0.000000e+00 : f32
    %12 = vector.broadcast %cst_13 : f32 to vector<8x32xf32>
    %cst_14 = arith.constant 0.000000e+00 : f32
    %13 = vector.broadcast %cst_14 : f32 to vector<8x32xf32>
    %cst_15 = arith.constant 0.000000e+00 : f32
    %14 = vector.broadcast %cst_15 : f32 to vector<8x32xf32>
    %cst_16 = arith.constant 0.000000e+00 : f32
    %15 = vector.broadcast %cst_16 : f32 to vector<8x32xf32>
    %16 = vector.extract_strided_slice %11 {offsets = [0, 0], sizes = [8, 128], strides = [1, 1]} : vector<32x128xf32> to vector<8x128xf32>
    %cst_17 = arith.constant dense<0.000000e+00> : vector<8x128xf32>
    %17 = tpu.matmul %12, %2, %cst_17 {dimension_numbers = #tpu.dot_dimension_numbers<[1], [0], [0], [1], [0, 0, 1, 1], [], []>} : vector<8x32xf32>, vector<32x128xf32>, vector<8x128xf32> -> vector<8x128xf32>
    %18 = arith.addf %16, %17 : vector<8x128xf32>
    %19 = arith.negf %18 : vector<8x128xf32>
    %20 = math.exp %19 : vector<8x128xf32>
    %cst_18 = arith.constant 1.000000e+00 : f32
    %21 = vector.broadcast %cst_18 : f32 to vector<8x128xf32>
    %22 = arith.addf %21, %20 : vector<8x128xf32>
    %23 = arith.divf %21, %22 : vector<8x128xf32>
    %24 = math.tanh %18 : vector<8x128xf32>
    %25 = vector.extract_strided_slice %23 {offsets = [0, 0], sizes = [8, 32], strides = [1, 1]} : vector<8x128xf32> to vector<8x32xf32>
    %26 = vector.extract_strided_slice %23 {offsets = [0, 32], sizes = [8, 32], strides = [1, 1]} : vector<8x128xf32> to vector<8x32xf32>
    %27 = vector.extract_strided_slice %24 {offsets = [0, 64], sizes = [8, 32], strides = [1, 1]} : vector<8x128xf32> to vector<8x32xf32>
    %28 = vector.extract_strided_slice %23 {offsets = [0, 96], sizes = [8, 32], strides = [1, 1]} : vector<8x128xf32> to vector<8x32xf32>
    %29 = arith.mulf %26, %14 : vector<8x32xf32>
    %30 = arith.mulf %25, %27 : vector<8x32xf32>
    %31 = arith.addf %29, %30 : vector<8x32xf32>
    %32 = math.tanh %31 : vector<8x32xf32>
    %33 = arith.mulf %28, %32 : vector<8x32xf32>
    %cst_19 = arith.constant dense<0.000000e+00> : vector<8x128xf32>
    %34 = tpu.matmul %33, %1, %cst_19 {dimension_numbers = #tpu.dot_dimension_numbers<[1], [0], [0], [1], [0, 0, 1, 1], [], []>} : vector<8x32xf32>, vector<32x128xf32>, vector<8x128xf32> -> vector<8x128xf32>
    %cst_20 = arith.constant dense<0.000000e+00> : vector<8x128xf32>
    %35 = tpu.matmul %13, %3, %cst_20 {dimension_numbers = #tpu.dot_dimension_numbers<[1], [0], [0], [1], [0, 0, 1, 1], [], []>} : vector<8x32xf32>, vector<32x128xf32>, vector<8x128xf32> -> vector<8x128xf32>
    %36 = arith.addf %34, %35 : vector<8x128xf32>
    %37 = arith.addf %36, %7 : vector<8x128xf32>
    %38 = arith.negf %37 : vector<8x128xf32>
    %39 = math.exp %38 : vector<8x128xf32>
    %cst_21 = arith.constant 1.000000e+00 : f32
    %40 = vector.broadcast %cst_21 : f32 to vector<8x128xf32>
    %41 = arith.addf %40, %39 : vector<8x128xf32>
    %42 = arith.divf %40, %41 : vector<8x128xf32>
    %43 = math.tanh %37 : vector<8x128xf32>
    %44 = vector.extract_strided_slice %42 {offsets = [0, 0], sizes = [8, 32], strides = [1, 1]} : vector<8x128xf32> to vector<8x32xf32>
    %45 = vector.extract_strided_slice %42 {offsets = [0, 32], sizes = [8, 32], strides = [1, 1]} : vector<8x128xf32> to vector<8x32xf32>
    %46 = vector.extract_strided_slice %43 {offsets = [0, 64], sizes = [8, 32], strides = [1, 1]} : vector<8x128xf32> to vector<8x32xf32>
    %47 = vector.extract_strided_slice %42 {offsets = [0, 96], sizes = [8, 32], strides = [1, 1]} : vector<8x128xf32> to vector<8x32xf32>
    %48 = arith.mulf %45, %15 : vector<8x32xf32>
    %49 = arith.mulf %44, %46 : vector<8x32xf32>
    %50 = arith.addf %48, %49 : vector<8x32xf32>
    %51 = math.tanh %50 : vector<8x32xf32>
    %52 = arith.mulf %47, %51 : vector<8x32xf32>
    %53 = vector.extract_strided_slice %11 {offsets = [8, 0], sizes = [8, 128], strides = [1, 1]} : vector<32x128xf32> to vector<8x128xf32>
    %cst_22 = arith.constant dense<0.000000e+00> : vector<8x128xf32>
    %54 = tpu.matmul %33, %2, %cst_22 {dimension_numbers = #tpu.dot_dimension_numbers<[1], [0], [0], [1], [0, 0, 1, 1], [], []>} : vector<8x32xf32>, vector<32x128xf32>, vector<8x128xf32> -> vector<8x128xf32>
    %55 = arith.addf %53, %54 : vector<8x128xf32>
    %56 = arith.negf %55 : vector<8x128xf32>
    %57 = math.exp %56 : vector<8x128xf32>
    %cst_23 = arith.constant 1.000000e+00 : f32
    %58 = vector.broadcast %cst_23 : f32 to vector<8x128xf32>
    %59 = arith.addf %58, %57 : vector<8x128xf32>
    %60 = arith.divf %58, %59 : vector<8x128xf32>
    %61 = math.tanh %55 : vector<8x128xf32>
    %62 = vector.extract_strided_slice %60 {offsets = [0, 0], sizes = [8, 32], strides = [1, 1]} : vector<8x128xf32> to vector<8x32xf32>
    %63 = vector.extract_strided_slice %60 {offsets = [0, 32], sizes = [8, 32], strides = [1, 1]} : vector<8x128xf32> to vector<8x32xf32>
    %64 = vector.extract_strided_slice %61 {offsets = [0, 64], sizes = [8, 32], strides = [1, 1]} : vector<8x128xf32> to vector<8x32xf32>
    %65 = vector.extract_strided_slice %60 {offsets = [0, 96], sizes = [8, 32], strides = [1, 1]} : vector<8x128xf32> to vector<8x32xf32>
    %66 = arith.mulf %63, %31 : vector<8x32xf32>
    %67 = arith.mulf %62, %64 : vector<8x32xf32>
    %68 = arith.addf %66, %67 : vector<8x32xf32>
    %69 = math.tanh %68 : vector<8x32xf32>
    %70 = arith.mulf %65, %69 : vector<8x32xf32>
    %cst_24 = arith.constant dense<0.000000e+00> : vector<8x128xf32>
    %71 = tpu.matmul %70, %1, %cst_24 {dimension_numbers = #tpu.dot_dimension_numbers<[1], [0], [0], [1], [0, 0, 1, 1], [], []>} : vector<8x32xf32>, vector<32x128xf32>, vector<8x128xf32> -> vector<8x128xf32>
    %cst_25 = arith.constant dense<0.000000e+00> : vector<8x128xf32>
    %72 = tpu.matmul %52, %3, %cst_25 {dimension_numbers = #tpu.dot_dimension_numbers<[1], [0], [0], [1], [0, 0, 1, 1], [], []>} : vector<8x32xf32>, vector<32x128xf32>, vector<8x128xf32> -> vector<8x128xf32>
    %73 = arith.addf %71, %72 : vector<8x128xf32>
    %74 = arith.addf %73, %7 : vector<8x128xf32>
    %75 = arith.negf %74 : vector<8x128xf32>
    %76 = math.exp %75 : vector<8x128xf32>
    %cst_26 = arith.constant 1.000000e+00 : f32
    %77 = vector.broadcast %cst_26 : f32 to vector<8x128xf32>
    %78 = arith.addf %77, %76 : vector<8x128xf32>
    %79 = arith.divf %77, %78 : vector<8x128xf32>
    %80 = math.tanh %74 : vector<8x128xf32>
    %81 = vector.extract_strided_slice %79 {offsets = [0, 0], sizes = [8, 32], strides = [1, 1]} : vector<8x128xf32> to vector<8x32xf32>
    %82 = vector.extract_strided_slice %79 {offsets = [0, 32], sizes = [8, 32], strides = [1, 1]} : vector<8x128xf32> to vector<8x32xf32>
    %83 = vector.extract_strided_slice %80 {offsets = [0, 64], sizes = [8, 32], strides = [1, 1]} : vector<8x128xf32> to vector<8x32xf32>
    %84 = vector.extract_strided_slice %79 {offsets = [0, 96], sizes = [8, 32], strides = [1, 1]} : vector<8x128xf32> to vector<8x32xf32>
    %85 = arith.mulf %82, %50 : vector<8x32xf32>
    %86 = arith.mulf %81, %83 : vector<8x32xf32>
    %87 = arith.addf %85, %86 : vector<8x32xf32>
    %88 = math.tanh %87 : vector<8x32xf32>
    %89 = arith.mulf %84, %88 : vector<8x32xf32>
    %90 = vector.extract_strided_slice %11 {offsets = [16, 0], sizes = [8, 128], strides = [1, 1]} : vector<32x128xf32> to vector<8x128xf32>
    %cst_27 = arith.constant dense<0.000000e+00> : vector<8x128xf32>
    %91 = tpu.matmul %70, %2, %cst_27 {dimension_numbers = #tpu.dot_dimension_numbers<[1], [0], [0], [1], [0, 0, 1, 1], [], []>} : vector<8x32xf32>, vector<32x128xf32>, vector<8x128xf32> -> vector<8x128xf32>
    %92 = arith.addf %90, %91 : vector<8x128xf32>
    %93 = arith.negf %92 : vector<8x128xf32>
    %94 = math.exp %93 : vector<8x128xf32>
    %cst_28 = arith.constant 1.000000e+00 : f32
    %95 = vector.broadcast %cst_28 : f32 to vector<8x128xf32>
    %96 = arith.addf %95, %94 : vector<8x128xf32>
    %97 = arith.divf %95, %96 : vector<8x128xf32>
    %98 = math.tanh %92 : vector<8x128xf32>
    %99 = vector.extract_strided_slice %97 {offsets = [0, 0], sizes = [8, 32], strides = [1, 1]} : vector<8x128xf32> to vector<8x32xf32>
    %100 = vector.extract_strided_slice %97 {offsets = [0, 32], sizes = [8, 32], strides = [1, 1]} : vector<8x128xf32> to vector<8x32xf32>
    %101 = vector.extract_strided_slice %98 {offsets = [0, 64], sizes = [8, 32], strides = [1, 1]} : vector<8x128xf32> to vector<8x32xf32>
    %102 = vector.extract_strided_slice %97 {offsets = [0, 96], sizes = [8, 32], strides = [1, 1]} : vector<8x128xf32> to vector<8x32xf32>
    %103 = arith.mulf %100, %68 : vector<8x32xf32>
    %104 = arith.mulf %99, %101 : vector<8x32xf32>
    %105 = arith.addf %103, %104 : vector<8x32xf32>
    %106 = math.tanh %105 : vector<8x32xf32>
    %107 = arith.mulf %102, %106 : vector<8x32xf32>
    %cst_29 = arith.constant dense<0.000000e+00> : vector<8x128xf32>
    %108 = tpu.matmul %107, %1, %cst_29 {dimension_numbers = #tpu.dot_dimension_numbers<[1], [0], [0], [1], [0, 0, 1, 1], [], []>} : vector<8x32xf32>, vector<32x128xf32>, vector<8x128xf32> -> vector<8x128xf32>
    %cst_30 = arith.constant dense<0.000000e+00> : vector<8x128xf32>
    %109 = tpu.matmul %89, %3, %cst_30 {dimension_numbers = #tpu.dot_dimension_numbers<[1], [0], [0], [1], [0, 0, 1, 1], [], []>} : vector<8x32xf32>, vector<32x128xf32>, vector<8x128xf32> -> vector<8x128xf32>
    %110 = arith.addf %108, %109 : vector<8x128xf32>
    %111 = arith.addf %110, %7 : vector<8x128xf32>
    %112 = arith.negf %111 : vector<8x128xf32>
    %113 = math.exp %112 : vector<8x128xf32>
    %cst_31 = arith.constant 1.000000e+00 : f32
    %114 = vector.broadcast %cst_31 : f32 to vector<8x128xf32>
    %115 = arith.addf %114, %113 : vector<8x128xf32>
    %116 = arith.divf %114, %115 : vector<8x128xf32>
    %117 = math.tanh %111 : vector<8x128xf32>
    %118 = vector.extract_strided_slice %116 {offsets = [0, 0], sizes = [8, 32], strides = [1, 1]} : vector<8x128xf32> to vector<8x32xf32>
    %119 = vector.extract_strided_slice %116 {offsets = [0, 32], sizes = [8, 32], strides = [1, 1]} : vector<8x128xf32> to vector<8x32xf32>
    %120 = vector.extract_strided_slice %117 {offsets = [0, 64], sizes = [8, 32], strides = [1, 1]} : vector<8x128xf32> to vector<8x32xf32>
    %121 = vector.extract_strided_slice %116 {offsets = [0, 96], sizes = [8, 32], strides = [1, 1]} : vector<8x128xf32> to vector<8x32xf32>
    %122 = arith.mulf %119, %87 : vector<8x32xf32>
    %123 = arith.mulf %118, %120 : vector<8x32xf32>
    %124 = arith.addf %122, %123 : vector<8x32xf32>
    %125 = math.tanh %124 : vector<8x32xf32>
    %126 = arith.mulf %121, %125 : vector<8x32xf32>
    %127 = vector.extract_strided_slice %11 {offsets = [24, 0], sizes = [8, 128], strides = [1, 1]} : vector<32x128xf32> to vector<8x128xf32>
    %cst_32 = arith.constant dense<0.000000e+00> : vector<8x128xf32>
    %128 = tpu.matmul %107, %2, %cst_32 {dimension_numbers = #tpu.dot_dimension_numbers<[1], [0], [0], [1], [0, 0, 1, 1], [], []>} : vector<8x32xf32>, vector<32x128xf32>, vector<8x128xf32> -> vector<8x128xf32>
    %129 = arith.addf %127, %128 : vector<8x128xf32>
    %130 = arith.negf %129 : vector<8x128xf32>
    %131 = math.exp %130 : vector<8x128xf32>
    %cst_33 = arith.constant 1.000000e+00 : f32
    %132 = vector.broadcast %cst_33 : f32 to vector<8x128xf32>
    %133 = arith.addf %132, %131 : vector<8x128xf32>
    %134 = arith.divf %132, %133 : vector<8x128xf32>
    %135 = math.tanh %129 : vector<8x128xf32>
    %136 = vector.extract_strided_slice %134 {offsets = [0, 0], sizes = [8, 32], strides = [1, 1]} : vector<8x128xf32> to vector<8x32xf32>
    %137 = vector.extract_strided_slice %134 {offsets = [0, 32], sizes = [8, 32], strides = [1, 1]} : vector<8x128xf32> to vector<8x32xf32>
    %138 = vector.extract_strided_slice %135 {offsets = [0, 64], sizes = [8, 32], strides = [1, 1]} : vector<8x128xf32> to vector<8x32xf32>
    %139 = vector.extract_strided_slice %134 {offsets = [0, 96], sizes = [8, 32], strides = [1, 1]} : vector<8x128xf32> to vector<8x32xf32>
    %140 = arith.mulf %137, %105 : vector<8x32xf32>
    %141 = arith.mulf %136, %138 : vector<8x32xf32>
    %142 = arith.addf %140, %141 : vector<8x32xf32>
    %143 = math.tanh %142 : vector<8x32xf32>
    %144 = arith.mulf %139, %143 : vector<8x32xf32>
    %cst_34 = arith.constant dense<0.000000e+00> : vector<8x128xf32>
    %145 = tpu.matmul %144, %1, %cst_34 {dimension_numbers = #tpu.dot_dimension_numbers<[1], [0], [0], [1], [0, 0, 1, 1], [], []>} : vector<8x32xf32>, vector<32x128xf32>, vector<8x128xf32> -> vector<8x128xf32>
    %cst_35 = arith.constant dense<0.000000e+00> : vector<8x128xf32>
    %146 = tpu.matmul %126, %3, %cst_35 {dimension_numbers = #tpu.dot_dimension_numbers<[1], [0], [0], [1], [0, 0, 1, 1], [], []>} : vector<8x32xf32>, vector<32x128xf32>, vector<8x128xf32> -> vector<8x128xf32>
    %147 = arith.addf %145, %146 : vector<8x128xf32>
    %148 = arith.addf %147, %7 : vector<8x128xf32>
    %149 = arith.negf %148 : vector<8x128xf32>
    %150 = math.exp %149 : vector<8x128xf32>
    %cst_36 = arith.constant 1.000000e+00 : f32
    %151 = vector.broadcast %cst_36 : f32 to vector<8x128xf32>
    %152 = arith.addf %151, %150 : vector<8x128xf32>
    %153 = arith.divf %151, %152 : vector<8x128xf32>
    %154 = math.tanh %148 : vector<8x128xf32>
    %155 = vector.extract_strided_slice %153 {offsets = [0, 0], sizes = [8, 32], strides = [1, 1]} : vector<8x128xf32> to vector<8x32xf32>
    %156 = vector.extract_strided_slice %153 {offsets = [0, 32], sizes = [8, 32], strides = [1, 1]} : vector<8x128xf32> to vector<8x32xf32>
    %157 = vector.extract_strided_slice %154 {offsets = [0, 64], sizes = [8, 32], strides = [1, 1]} : vector<8x128xf32> to vector<8x32xf32>
    %158 = vector.extract_strided_slice %153 {offsets = [0, 96], sizes = [8, 32], strides = [1, 1]} : vector<8x128xf32> to vector<8x32xf32>
    %159 = arith.mulf %156, %124 : vector<8x32xf32>
    %160 = arith.mulf %155, %157 : vector<8x32xf32>
    %161 = arith.addf %159, %160 : vector<8x32xf32>
    %162 = math.tanh %161 : vector<8x32xf32>
    %163 = arith.mulf %158, %162 : vector<8x32xf32>
    %c0_37 = arith.constant 0 : index
    %c0_38 = arith.constant 0 : index
    %164 = vector.load %arg7[%c0_37, %c0_38] : memref<8x32xf32, #tpu.memory_space<vmem>>, vector<8x32xf32>
    %165 = arith.mulf %163, %164 : vector<8x32xf32>
    %c0_39 = arith.constant 0 : index
    %c0_40 = arith.constant 0 : index
    %166 = vector.load %arg8[%c0_39, %c0_40] : memref<32x10xf32, #tpu.memory_space<vmem>>, vector<32x10xf32>
    %cst_41 = arith.constant dense<0.000000e+00> : vector<8x10xf32>
    %167 = tpu.matmul %165, %166, %cst_41 {dimension_numbers = #tpu.dot_dimension_numbers<[1], [0], [0], [1], [0, 0, 1, 1], [], []>} : vector<8x32xf32>, vector<32x10xf32>, vector<8x10xf32> -> vector<8x10xf32>
    %c0_42 = arith.constant 0 : index
    %c0_43 = arith.constant 0 : index
    %168 = vector.load %arg9[%c0_42, %c0_43] : memref<1x10xf32, #tpu.memory_space<vmem>>, vector<1x10xf32>
    %169 = vector.broadcast %168 : vector<1x10xf32> to vector<8x10xf32>
    %170 = arith.addf %167, %169 : vector<8x10xf32>
    %c0_44 = arith.constant 0 : index
    %c0_45 = arith.constant 0 : index
    %171 = vector.load %arg10[%c0_44, %c0_45] : memref<8x10xf32, #tpu.memory_space<vmem>>, vector<8x10xf32>
    tpu.vector_store %arg10[%c0_44, %c0_45], %170 {strides = array<i32>} : memref<8x10xf32, #tpu.memory_space<vmem>>, vector<8x10xf32>,
    return
  }
}

</mosaic_0001>

<llo_original>
// kernel: stacked_lstm_one_forward.1
$region0: #{stacked_lstm_one_forward.1}
  #allocation0 [shape = 'u32[]', space=smem, size = 0x4, offset = 0x4, fixed_abs, tag = 'smem constant byte address 0x4 - core index']
  #allocation1 [shape = 'u32[72,128]{1,0:T(1,128)}', space=vmem, size = 0x9000, scoped, tag = 'internal scratch']
  %s0 = inlined_call_operand.vmem [shape: f32[32,16], index: 0, kind: input, shape index: {}]
  %s1 = inlined_call_operand.vmem [shape: f32[16,128], index: 1, kind: input, shape index: {}]
  %s2 = inlined_call_operand.vmem [shape: f32[32,128], index: 2, kind: input, shape index: {}]
  %s3 = inlined_call_operand.vmem [shape: f32[1,128], index: 3, kind: input, shape index: {}]
  %s4 = inlined_call_operand.vmem [shape: f32[32,128], index: 4, kind: input, shape index: {}]
  %s5 = inlined_call_operand.vmem [shape: f32[32,128], index: 5, kind: input, shape index: {}]
  %s6 = inlined_call_operand.vmem [shape: f32[1,128], index: 6, kind: input, shape index: {}]
  %s7 = inlined_call_operand.vmem [shape: f32[8,32], index: 7, kind: input, shape index: {}]
  %s8 = inlined_call_operand.vmem [shape: f32[32,10], index: 8, kind: input, shape index: {}]
  %s9 = inlined_call_operand.vmem [shape: f32[1,10], index: 9, kind: input, shape index: {}]
  %s10 = inlined_call_operand.hbm [shape: f32[8,10], index: 10, kind: output, shape index: {}]
  %s11 = sld [smem:[#allocation0]]
  $region50: #{stacked_lstm_one_forward.1} parent=0
    _
  %s13 = ssub.s32 1, %s11
  %s14 = scalar_select 0, %s13, %s11
  $region1: #{stacked_lstm_one_forward.1} parent=0
    #allocation2 [shape = 'u8[4096]{0}', space=vmem, size = 0x1000, scoped, tag = 'output window, operand 0, single buffered']
    #allocation3 [shape = 's32[1]{0}', space=sflag, size = 0x4, scoped, tag = 'scoped memory for stacked_lstm_one_forward.1']
    %15 = vsyncpa [#allocation3], 0
    // Predicated region
    $region2: #{stacked_lstm_one_forward.1} parent=1 // pred_check
      _
    $region3: #{stacked_lstm_one_forward.1} parent=1 // pred_check_branch
      %17 = sbr.rel (0) target = $region5
    $region4: #{stacked_lstm_one_forward.1} parent=1 // pred_region
      _
    $region5: #{stacked_lstm_one_forward.1} parent=1 // pred_fallthru
      _
    // Predicated region
    $region6: #{stacked_lstm_one_forward.1} parent=1 // pred_check
      _
    $region7: #{stacked_lstm_one_forward.1} parent=1 // pred_check_branch
      %19 = sbr.rel (0) target = $region9
    $region8: #{stacked_lstm_one_forward.1} parent=1 // pred_region
      _
    $region9: #{stacked_lstm_one_forward.1} parent=1 // pred_fallthru
      _
    // Predicated region
    $region10: #{stacked_lstm_one_forward.1} parent=1 // pred_check
      _
    $region11: #{stacked_lstm_one_forward.1} parent=1 // pred_check_branch
      %21 = sbr.rel (0) target = $region13
    $region12: #{stacked_lstm_one_forward.1} parent=1 // pred_region
      _
    $region13: #{stacked_lstm_one_forward.1} parent=1 // pred_fallthru
      _
    // Predicated region
    $region14: #{stacked_lstm_one_forward.1} parent=1 // pred_check
      _
    $region15: #{stacked_lstm_one_forward.1} parent=1 // pred_check_branch
      %23 = sbr.rel (0) target = $region17
    $region16: #{stacked_lstm_one_forward.1} parent=1 // pred_region
      _
    $region17: #{stacked_lstm_one_forward.1} parent=1 // pred_fallthru
      _
    // Predicated region
    $region18: #{stacked_lstm_one_forward.1} parent=1 // pred_check
      _
    $region19: #{stacked_lstm_one_forward.1} parent=1 // pred_check_branch
      %25 = sbr.rel (0) target = $region21
    $region20: #{stacked_lstm_one_forward.1} parent=1 // pred_region
      _
    $region21: #{stacked_lstm_one_forward.1} parent=1 // pred_fallthru
      _
    // Predicated region
    $region22: #{stacked_lstm_one_forward.1} parent=1 // pred_check
      _
    $region23: #{stacked_lstm_one_forward.1} parent=1 // pred_check_branch
      %27 = sbr.rel (0) target = $region25
    $region24: #{stacked_lstm_one_forward.1} parent=1 // pred_region
      _
    $region25: #{stacked_lstm_one_forward.1} parent=1 // pred_fallthru
      _
    // Predicated region
    $region26: #{stacked_lstm_one_forward.1} parent=1 // pred_check
      _
    $region27: #{stacked_lstm_one_forward.1} parent=1 // pred_check_branch
      %29 = sbr.rel (0) target = $region29
    $region28: #{stacked_lstm_one_forward.1} parent=1 // pred_region
      _
    $region29: #{stacked_lstm_one_forward.1} parent=1 // pred_fallthru
      _
    // Predicated region
    $region30: #{stacked_lstm_one_forward.1} parent=1 // pred_check
      _
    $region31: #{stacked_lstm_one_forward.1} parent=1 // pred_check_branch
      %31 = sbr.rel (0) target = $region33
    $region32: #{stacked_lstm_one_forward.1} parent=1 // pred_region
      _
    $region33: #{stacked_lstm_one_forward.1} parent=1 // pred_fallthru
      _
    // Predicated region
    $region34: #{stacked_lstm_one_forward.1} parent=1 // pred_check
      _
    $region35: #{stacked_lstm_one_forward.1} parent=1 // pred_check_branch
      %33 = sbr.rel (0) target = $region37
    $region36: #{stacked_lstm_one_forward.1} parent=1 // pred_region
      _
    $region37: #{stacked_lstm_one_forward.1} parent=1 // pred_fallthru
      _
    // Predicated region
    $region38: #{stacked_lstm_one_forward.1} parent=1 // pred_check
      _
    $region39: #{stacked_lstm_one_forward.1} parent=1 // pred_check_branch
      %35 = sbr.rel (0) target = $region41
    $region40: #{stacked_lstm_one_forward.1} parent=1 // pred_region
      _
    $region41: #{stacked_lstm_one_forward.1} parent=1 // pred_fallthru
      _
    %v36 = vld [vmem:[%s1] sm:$0xff]
    %v37 = vld [vmem:[%s1 + $0x8] sm:$0xff]
    %v38 = vld [vmem:[%s4] sm:$0xff]
    %v39 = vld [vmem:[%s4 + $0x8] sm:$0xff]
    %v40 = vld [vmem:[%s4 + $0x10] sm:$0xff]
    %v41 = vld [vmem:[%s4 + $0x18] sm:$0xff]
    %v42 = vld [vmem:[%s2] sm:$0xff]
    %v43 = vld [vmem:[%s2 + $0x8] sm:$0xff]
    %v44 = vld [vmem:[%s2 + $0x10] sm:$0xff]
    %v45 = vld [vmem:[%s2 + $0x18] sm:$0xff]
    %v46 = vld [vmem:[%s5] sm:$0xff]
    %v47 = vld [vmem:[%s5 + $0x8] sm:$0xff]
    %v48 = vld [vmem:[%s5 + $0x10] sm:$0xff]
    %v49 = vld [vmem:[%s5 + $0x18] sm:$0xff]
    %v50 = vld [vmem:[%s3] sm:$0x1]
    %v51 = vld [vmem:[%s6] sm:$0x1]
    %v53 = vperm.slane %v51, 0
    %v55 = vld [vmem:[%s0] sm:$0xff]
    %v56 = vld [vmem:[%s0 + $0x8] sm:$0xff]
    %v57 = vld [vmem:[%s0 + $0x10] sm:$0xff]
    %v58 = vld [vmem:[%s0 + $0x18] sm:$0xff]
    %v60 = vperm.slane %v50, 0
    %vm62 = vcmask 130048
    %v64 = vsel %vm62, %v55, 0
    %v67 = vsel %vm62, %v56, 0
    %v70 = vsel %vm62, %v57, 0
    %v73 = vsel %vm62, %v58, 0
    %75 = vmatpush.msra.mxu0 0.0
    %76 = vmatpush.msra.mxu0 0.0
    %77 = vmatpush.msra.mxu0 0.0
    %78 = vmatpush.msra.mxu0 0.0
    %79 = vmatpush.msra.mxu0 0.0
    %80 = vmatpush.msra.mxu0 0.0
    %81 = vmatpush.msra.mxu0 0.0
    %82 = vmatpush.msra.mxu0 0.0
    %83 = vmatpush.msra.mxu0 0.0
    %84 = vmatpush.msra.mxu0 0.0
    %85 = vmatpush.msra.mxu0 0.0
    %86 = vmatpush.msra.mxu0 0.0
    %87 = vmatpush.msra.mxu0 0.0
    %88 = vmatpush.msra.mxu0 0.0
    %89 = vmatpush.msra.mxu0 %v37
    %90 = vmatpush.msra.mxu0 %v36
    %91 = vmatmul.f32.gmra.mxu0 %v64
    %v92 = vpop.f32.mrf.mxu0
    %v93 = vadd.f32 %v60, %v92
    %94 = vmatmul.f32.gmra.mxu0 %v67
    %v95 = vpop.f32.mrf.mxu0
    %v96 = vadd.f32 %v60, %v95
    %97 = vmatmul.f32.gmra.mxu0 %v70
    %v98 = vpop.f32.mrf.mxu0
    %v99 = vadd.f32 %v60, %v98
    %100 = vmatmul.f32.gmra.mxu0 %v73
    %v101 = vpop.f32.mrf.mxu0
    %v102 = vadd.f32 %v60, %v101
    %103 = vdwg.mxu0
    %vm104 = vcmask 261120
    %v106 = vsel %vm104, 0.0, 0
    %108 = vmatpush.msra.mxu0 0.0
    %109 = vmatpush.msra.mxu0 0.0
    %110 = vmatpush.msra.mxu0 0.0
    %111 = vmatpush.msra.mxu0 0.0
    %112 = vmatpush.msra.mxu0 0.0
    %113 = vmatpush.msra.mxu0 0.0
    %114 = vmatpush.msra.mxu0 0.0
    %115 = vmatpush.msra.mxu0 0.0
    %116 = vmatpush.msra.mxu0 0.0
    %117 = vmatpush.msra.mxu0 0.0
    %118 = vmatpush.msra.mxu0 0.0
    %119 = vmatpush.msra.mxu0 0.0
    %120 = vmatpush.msra.mxu0 %v45
    %121 = vmatpush.msra.mxu0 %v44
    %122 = vmatpush.msra.mxu0 %v43
    %123 = vmatpush.msra.mxu0 %v42
    %124 = vmatmul.f32.gmra.mxu0 %v106
    %v125 = vpop.f32.mrf.mxu0
    %v126 = vadd.f32 0.0, %v125
    %127 = vdwg.mxu0
    %v128 = vadd.f32 %v93, %v126
    %v129 = vxor.u32 %v128, 2147483648
    %v130 = vmul.f32 %v129, 1.442695
    %v131 = vpow.pop %v130
    %v132 = vadd.f32 %v131, 1.0
    %v133 = vrcp.pop %v132
    %v134 = vmul.f32 %v132, %v133
    %v135 = vsub.f32 1.0, %v134
    %v136 = vmul.f32 %v133, %v135
    %v137 = vadd.f32 %v133, %v136
    %vm138 = vweird.f32 %v132
    %vm139 = vweird.f32 %v133
    %vm140 = vmor %vm138, %vm139
    %v141 = vsel %vm140, %v133, %v137
    %v142 = vand.u32 2147483647, %v132
    %vm143 = vcmp.eq.f32.partialorder %v142, 8.507059e+37
    %v144 = vand.u32 %v132, 2147483648
    %v145 = vor.u32 1.1754944e-38, %v144
    %v146 = vsel %vm143, %v145, %v141
    %v147 = vmul.f32 1.0, %v146
    %v148 = vtanh.pop %v128
    %v149 = vmul.f32 %v147, 0.0
    %151 = vrot.lane.b32.xlu0 %v148, 64
    %v152 = vpop.permute.xlu0 %151
    %v154 = vmul.f32 %v147, %v152
    %156 = vrot.lane.b32.xlu0 %v154, 32
    %v157 = vpop.permute.xlu0 %156
    %v159 = vadd.f32 %v149, %v157
    %v160 = vtanh.pop %v159
    %162 = vrot.lane.b32.xlu0 %v160, 64
    %v163 = vpop.permute.xlu0 %162
    %v165 = vmul.f32 %v147, %v163
    %166 = vmatpush.msra.mxu0 0.0
    %167 = vmatpush.msra.mxu0 0.0
    %168 = vmatpush.msra.mxu0 0.0
    %169 = vmatpush.msra.mxu0 0.0
    %170 = vmatpush.msra.mxu0 0.0
    %171 = vmatpush.msra.mxu0 0.0
    %172 = vmatpush.msra.mxu0 0.0
    %173 = vmatpush.msra.mxu0 0.0
    %174 = vmatpush.msra.mxu0 0.0
    %175 = vmatpush.msra.mxu0 0.0
    %176 = vmatpush.msra.mxu0 0.0
    %177 = vmatpush.msra.mxu0 0.0
    %178 = vmatpush.msra.mxu0 %v49
    %179 = vmatpush.msra.mxu0 %v48
    %180 = vmatpush.msra.mxu0 %v47
    %181 = vmatpush.msra.mxu0 %v46
    %182 = vmatmul.f32.gmra.mxu0 %v106
    %v183 = vpop.f32.mrf.mxu0
    %v184 = vadd.f32 0.0, %v183
    %185 = vdwg.mxu0
    %187 = vrot.lane.b32.xlu0 %v165, 32
    %v188 = vpop.permute.xlu0 %187
    %v189 = vsel %vm104, %v188, 0
    %191 = vmatpush.msra.mxu0 0.0
    %192 = vmatpush.msra.mxu0 0.0
    %193 = vmatpush.msra.mxu0 0.0
    %194 = vmatpush.msra.mxu0 0.0
    %195 = vmatpush.msra.mxu0 0.0
    %196 = vmatpush.msra.mxu0 0.0
    %197 = vmatpush.msra.mxu0 0.0
    %198 = vmatpush.msra.mxu0 0.0
    %199 = vmatpush.msra.mxu0 0.0
    %200 = vmatpush.msra.mxu0 0.0
    %201 = vmatpush.msra.mxu0 0.0
    %202 = vmatpush.msra.mxu0 0.0
    %203 = vmatpush.msra.mxu0 %v41
    %204 = vmatpush.msra.mxu0 %v40
    %205 = vmatpush.msra.mxu0 %v39
    %206 = vmatpush.msra.mxu0 %v38
    %207 = vmatmul.f32.gmra.mxu0 %v189
    %v208 = vpop.f32.mrf.mxu0
    %v209 = vadd.f32 %v184, %v208
    %210 = vdwg.mxu0
    %v211 = vadd.f32 %v209, %v53
    %v212 = vxor.u32 %v211, 2147483648
    %v213 = vmul.f32 %v212, 1.442695
    %v214 = vpow.pop %v213
    %v215 = vadd.f32 %v214, 1.0
    %v216 = vrcp.pop %v215
    %v217 = vmul.f32 %v215, %v216
    %v218 = vsub.f32 1.0, %v217
    %v219 = vmul.f32 %v216, %v218
    %v220 = vadd.f32 %v216, %v219
    %vm221 = vweird.f32 %v215
    %vm222 = vweird.f32 %v216
    %vm223 = vmor %vm221, %vm222
    %v224 = vsel %vm223, %v216, %v220
    %v225 = vand.u32 2147483647, %v215
    %vm226 = vcmp.eq.f32.partialorder %v225, 8.507059e+37
    %v227 = vand.u32 %v215, 2147483648
    %v228 = vor.u32 1.1754944e-38, %v227
    %v229 = vsel %vm226, %v228, %v224
    %v230 = vmul.f32 1.0, %v229
    %v231 = vtanh.pop %v211
    %v232 = vmul.f32 %v230, 0.0
    %234 = vrot.lane.b32.xlu0 %v231, 64
    %v235 = vpop.permute.xlu0 %234
    %v237 = vmul.f32 %v230, %v235
    %239 = vrot.lane.b32.xlu0 %v237, 32
    %v240 = vpop.permute.xlu0 %239
    %v242 = vadd.f32 %v232, %v240
    %v243 = vtanh.pop %v242
    %245 = vrot.lane.b32.xlu0 %v243, 64
    %v246 = vpop.permute.xlu0 %245
    %v248 = vmul.f32 %v230, %v246
    %249 = vmatpush.msra.mxu0 0.0
    %250 = vmatpush.msra.mxu0 0.0
    %251 = vmatpush.msra.mxu0 0.0
    %252 = vmatpush.msra.mxu0 0.0
    %253 = vmatpush.msra.mxu0 0.0
    %254 = vmatpush.msra.mxu0 0.0
    %255 = vmatpush.msra.mxu0 0.0
    %256 = vmatpush.msra.mxu0 0.0
    %257 = vmatpush.msra.mxu0 0.0
    %258 = vmatpush.msra.mxu0 0.0
    %259 = vmatpush.msra.mxu0 0.0
    %260 = vmatpush.msra.mxu0 0.0
    %261 = vmatpush.msra.mxu0 %v45
    %262 = vmatpush.msra.mxu0 %v44
    %263 = vmatpush.msra.mxu0 %v43
    %264 = vmatpush.msra.mxu0 %v42
    %265 = vmatmul.f32.gmra.mxu0 %v189
    %v266 = vpop.f32.mrf.mxu0
    %v267 = vadd.f32 0.0, %v266
    %268 = vdwg.mxu0
    %v269 = vadd.f32 %v96, %v267
    %v270 = vxor.u32 %v269, 2147483648
    %v271 = vmul.f32 %v270, 1.442695
    %v272 = vpow.pop %v271
    %v273 = vadd.f32 %v272, 1.0
    %v274 = vrcp.pop %v273
    %v275 = vmul.f32 %v273, %v274
    %v276 = vsub.f32 1.0, %v275
    %v277 = vmul.f32 %v274, %v276
    %v278 = vadd.f32 %v274, %v277
    %vm279 = vweird.f32 %v273
    %vm280 = vweird.f32 %v274
    %vm281 = vmor %vm279, %vm280
    %v282 = vsel %vm281, %v274, %v278
    %v283 = vand.u32 2147483647, %v273
    %vm284 = vcmp.eq.f32.partialorder %v283, 8.507059e+37
    %v285 = vand.u32 %v273, 2147483648
    %v286 = vor.u32 1.1754944e-38, %v285
    %v287 = vsel %vm284, %v286, %v282
    %v288 = vmul.f32 1.0, %v287
    %v289 = vtanh.pop %v269
    %v290 = vmul.f32 %v288, %v159
    %292 = vrot.lane.b32.xlu0 %v289, 64
    %v293 = vpop.permute.xlu0 %292
    %v295 = vmul.f32 %v288, %v293
    %297 = vrot.lane.b32.xlu0 %v295, 32
    %v298 = vpop.permute.xlu0 %297
    %v300 = vadd.f32 %v290, %v298
    %v301 = vtanh.pop %v300
    %303 = vrot.lane.b32.xlu0 %v301, 64
    %v304 = vpop.permute.xlu0 %303
    %v306 = vmul.f32 %v288, %v304
    %308 = vrot.lane.b32.xlu0 %v248, 32
    %v309 = vpop.permute.xlu0 %308
    %v310 = vsel %vm104, %v309, 0
    %312 = vmatpush.msra.mxu0 0.0
    %313 = vmatpush.msra.mxu0 0.0
    %314 = vmatpush.msra.mxu0 0.0
    %315 = vmatpush.msra.mxu0 0.0
    %316 = vmatpush.msra.mxu0 0.0
    %317 = vmatpush.msra.mxu0 0.0
    %318 = vmatpush.msra.mxu0 0.0
    %319 = vmatpush.msra.mxu0 0.0
    %320 = vmatpush.msra.mxu0 0.0
    %321 = vmatpush.msra.mxu0 0.0
    %322 = vmatpush.msra.mxu0 0.0
    %323 = vmatpush.msra.mxu0 0.0
    %324 = vmatpush.msra.mxu0 %v49
    %325 = vmatpush.msra.mxu0 %v48
    %326 = vmatpush.msra.mxu0 %v47
    %327 = vmatpush.msra.mxu0 %v46
    %328 = vmatmul.f32.gmra.mxu0 %v310
    %v329 = vpop.f32.mrf.mxu0
    %v330 = vadd.f32 0.0, %v329
    %331 = vdwg.mxu0
    %333 = vrot.lane.b32.xlu0 %v306, 32
    %v334 = vpop.permute.xlu0 %333
    %v335 = vsel %vm104, %v334, 0
    %337 = vmatpush.msra.mxu0 0.0
    %338 = vmatpush.msra.mxu0 0.0
    %339 = vmatpush.msra.mxu0 0.0
    %340 = vmatpush.msra.mxu0 0.0
    %341 = vmatpush.msra.mxu0 0.0
    %342 = vmatpush.msra.mxu0 0.0
    %343 = vmatpush.msra.mxu0 0.0
    %344 = vmatpush.msra.mxu0 0.0
    %345 = vmatpush.msra.mxu0 0.0
    %346 = vmatpush.msra.mxu0 0.0
    %347 = vmatpush.msra.mxu0 0.0
    %348 = vmatpush.msra.mxu0 0.0
    %349 = vmatpush.msra.mxu0 %v41
    %350 = vmatpush.msra.mxu0 %v40
    %351 = vmatpush.msra.mxu0 %v39
    %352 = vmatpush.msra.mxu0 %v38
    %353 = vmatmul.f32.gmra.mxu0 %v335
    %v354 = vpop.f32.mrf.mxu0
    %v355 = vadd.f32 %v330, %v354
    %356 = vdwg.mxu0
    %v357 = vadd.f32 %v355, %v53
    %v358 = vxor.u32 %v357, 2147483648
    %v359 = vmul.f32 %v358, 1.442695
    %v360 = vpow.pop %v359
    %v361 = vadd.f32 %v360, 1.0
    %v362 = vrcp.pop %v361
    %v363 = vmul.f32 %v361, %v362
    %v364 = vsub.f32 1.0, %v363
    %v365 = vmul.f32 %v362, %v364
    %v366 = vadd.f32 %v362, %v365
    %vm367 = vweird.f32 %v361
    %vm368 = vweird.f32 %v362
    %vm369 = vmor %vm367, %vm368
    %v370 = vsel %vm369, %v362, %v366
    %v371 = vand.u32 2147483647, %v361
    %vm372 = vcmp.eq.f32.partialorder %v371, 8.507059e+37
    %v373 = vand.u32 %v361, 2147483648
    %v374 = vor.u32 1.1754944e-38, %v373
    %v375 = vsel %vm372, %v374, %v370
    %v376 = vmul.f32 1.0, %v375
    %v377 = vtanh.pop %v357
    %v378 = vmul.f32 %v376, %v242
    %380 = vrot.lane.b32.xlu0 %v377, 64
    %v381 = vpop.permute.xlu0 %380
    %v383 = vmul.f32 %v376, %v381
    %385 = vrot.lane.b32.xlu0 %v383, 32
    %v386 = vpop.permute.xlu0 %385
    %v388 = vadd.f32 %v378, %v386
    %v389 = vtanh.pop %v388
    %391 = vrot.lane.b32.xlu0 %v389, 64
    %v392 = vpop.permute.xlu0 %391
    %v394 = vmul.f32 %v376, %v392
    %395 = vmatpush.msra.mxu0 0.0
    %396 = vmatpush.msra.mxu0 0.0
    %397 = vmatpush.msra.mxu0 0.0
    %398 = vmatpush.msra.mxu0 0.0
    %399 = vmatpush.msra.mxu0 0.0
    %400 = vmatpush.msra.mxu0 0.0
    %401 = vmatpush.msra.mxu0 0.0
    %402 = vmatpush.msra.mxu0 0.0
    %403 = vmatpush.msra.mxu0 0.0
    %404 = vmatpush.msra.mxu0 0.0
    %405 = vmatpush.msra.mxu0 0.0
    %406 = vmatpush.msra.mxu0 0.0
    %407 = vmatpush.msra.mxu0 %v45
    %408 = vmatpush.msra.mxu0 %v44
    %409 = vmatpush.msra.mxu0 %v43
    %410 = vmatpush.msra.mxu0 %v42
    %411 = vmatmul.f32.gmra.mxu0 %v335
    %v412 = vpop.f32.mrf.mxu0
    %v413 = vadd.f32 0.0, %v412
    %414 = vdwg.mxu0
    %v415 = vadd.f32 %v99, %v413
    %v416 = vxor.u32 %v415, 2147483648
    %v417 = vmul.f32 %v416, 1.442695
    %v418 = vpow.pop %v417
    %v419 = vadd.f32 %v418, 1.0
    %v420 = vrcp.pop %v419
    %v421 = vmul.f32 %v419, %v420
    %v422 = vsub.f32 1.0, %v421
    %v423 = vmul.f32 %v420, %v422
    %v424 = vadd.f32 %v420, %v423
    %vm425 = vweird.f32 %v419
    %vm426 = vweird.f32 %v420
    %vm427 = vmor %vm425, %vm426
    %v428 = vsel %vm427, %v420, %v424
    %v429 = vand.u32 2147483647, %v419
    %vm430 = vcmp.eq.f32.partialorder %v429, 8.507059e+37
    %v431 = vand.u32 %v419, 2147483648
    %v432 = vor.u32 1.1754944e-38, %v431
    %v433 = vsel %vm430, %v432, %v428
    %v434 = vmul.f32 1.0, %v433
    %v435 = vtanh.pop %v415
    %v436 = vmul.f32 %v434, %v300
    %438 = vrot.lane.b32.xlu0 %v435, 64
    %v439 = vpop.permute.xlu0 %438
    %v441 = vmul.f32 %v434, %v439
    %443 = vrot.lane.b32.xlu0 %v441, 32
    %v444 = vpop.permute.xlu0 %443
    %v446 = vadd.f32 %v436, %v444
    %v447 = vtanh.pop %v446
    %449 = vrot.lane.b32.xlu0 %v447, 64
    %v450 = vpop.permute.xlu0 %449
    %v452 = vmul.f32 %v434, %v450
    %454 = vrot.lane.b32.xlu0 %v394, 32
    %v455 = vpop.permute.xlu0 %454
    %v456 = vsel %vm104, %v455, 0
    %458 = vmatpush.msra.mxu0 0.0
    %459 = vmatpush.msra.mxu0 0.0
    %460 = vmatpush.msra.mxu0 0.0
    %461 = vmatpush.msra.mxu0 0.0
    %462 = vmatpush.msra.mxu0 0.0
    %463 = vmatpush.msra.mxu0 0.0
    %464 = vmatpush.msra.mxu0 0.0
    %465 = vmatpush.msra.mxu0 0.0
    %466 = vmatpush.msra.mxu0 0.0
    %467 = vmatpush.msra.mxu0 0.0
    %468 = vmatpush.msra.mxu0 0.0
    %469 = vmatpush.msra.mxu0 0.0
    %470 = vmatpush.msra.mxu0 %v49
    %471 = vmatpush.msra.mxu0 %v48
    %472 = vmatpush.msra.mxu0 %v47
    %473 = vmatpush.msra.mxu0 %v46
    %474 = vmatmul.f32.gmra.mxu0 %v456
    %v475 = vpop.f32.mrf.mxu0
    %v476 = vadd.f32 0.0, %v475
    %477 = vdwg.mxu0
    %479 = vrot.lane.b32.xlu0 %v452, 32
    %v480 = vpop.permute.xlu0 %479
    %v481 = vsel %vm104, %v480, 0
    %483 = vmatpush.msra.mxu0 0.0
    %484 = vmatpush.msra.mxu0 0.0
    %485 = vmatpush.msra.mxu0 0.0
    %486 = vmatpush.msra.mxu0 0.0
    %487 = vmatpush.msra.mxu0 0.0
    %488 = vmatpush.msra.mxu0 0.0
    %489 = vmatpush.msra.mxu0 0.0
    %490 = vmatpush.msra.mxu0 0.0
    %491 = vmatpush.msra.mxu0 0.0
    %492 = vmatpush.msra.mxu0 0.0
    %493 = vmatpush.msra.mxu0 0.0
    %494 = vmatpush.msra.mxu0 0.0
    %495 = vmatpush.msra.mxu0 %v41
    %496 = vmatpush.msra.mxu0 %v40
    %497 = vmatpush.msra.mxu0 %v39
    %498 = vmatpush.msra.mxu0 %v38
    %499 = vmatmul.f32.gmra.mxu0 %v481
    %v500 = vpop.f32.mrf.mxu0
    %v501 = vadd.f32 %v476, %v500
    %502 = vdwg.mxu0
    %v503 = vadd.f32 %v501, %v53
    %v504 = vxor.u32 %v503, 2147483648
    %v505 = vmul.f32 %v504, 1.442695
    %v506 = vpow.pop %v505
    %v507 = vadd.f32 %v506, 1.0
    %v508 = vrcp.pop %v507
    %v509 = vmul.f32 %v507, %v508
    %v510 = vsub.f32 1.0, %v509
    %v511 = vmul.f32 %v508, %v510
    %v512 = vadd.f32 %v508, %v511
    %vm513 = vweird.f32 %v507
    %vm514 = vweird.f32 %v508
    %vm515 = vmor %vm513, %vm514
    %v516 = vsel %vm515, %v508, %v512
    %v517 = vand.u32 2147483647, %v507
    %vm518 = vcmp.eq.f32.partialorder %v517, 8.507059e+37
    %v519 = vand.u32 %v507, 2147483648
    %v520 = vor.u32 1.1754944e-38, %v519
    %v521 = vsel %vm518, %v520, %v516
    %v522 = vmul.f32 1.0, %v521
    %v523 = vtanh.pop %v503
    %v524 = vmul.f32 %v522, %v388
    %526 = vrot.lane.b32.xlu0 %v523, 64
    %v527 = vpop.permute.xlu0 %526
    %v529 = vmul.f32 %v522, %v527
    %531 = vrot.lane.b32.xlu0 %v529, 32
    %v532 = vpop.permute.xlu0 %531
    %v534 = vadd.f32 %v524, %v532
    %v535 = vtanh.pop %v534
    %537 = vrot.lane.b32.xlu0 %v535, 64
    %v538 = vpop.permute.xlu0 %537
    %v540 = vmul.f32 %v522, %v538
    %541 = vmatpush.msra.mxu0 0.0
    %542 = vmatpush.msra.mxu0 0.0
    %543 = vmatpush.msra.mxu0 0.0
    %544 = vmatpush.msra.mxu0 0.0
    %545 = vmatpush.msra.mxu0 0.0
    %546 = vmatpush.msra.mxu0 0.0
    %547 = vmatpush.msra.mxu0 0.0
    %548 = vmatpush.msra.mxu0 0.0
    %549 = vmatpush.msra.mxu0 0.0
    %550 = vmatpush.msra.mxu0 0.0
    %551 = vmatpush.msra.mxu0 0.0
    %552 = vmatpush.msra.mxu0 0.0
    %553 = vmatpush.msra.mxu0 %v45
    %554 = vmatpush.msra.mxu0 %v44
    %555 = vmatpush.msra.mxu0 %v43
    %556 = vmatpush.msra.mxu0 %v42
    %557 = vmatmul.f32.gmra.mxu0 %v481
    %v558 = vpop.f32.mrf.mxu0
    %v559 = vadd.f32 0.0, %v558
    %560 = vdwg.mxu0
    %v561 = vadd.f32 %v102, %v559
    %v562 = vxor.u32 %v561, 2147483648
    %v563 = vmul.f32 %v562, 1.442695
    %v564 = vpow.pop %v563
    %v565 = vadd.f32 %v564, 1.0
    %v566 = vrcp.pop %v565
    %v567 = vmul.f32 %v565, %v566
    %v568 = vsub.f32 1.0, %v567
    %v569 = vmul.f32 %v566, %v568
    %v570 = vadd.f32 %v566, %v569
    %vm571 = vweird.f32 %v565
    %vm572 = vweird.f32 %v566
    %vm573 = vmor %vm571, %vm572
    %v574 = vsel %vm573, %v566, %v570
    %v575 = vand.u32 2147483647, %v565
    %vm576 = vcmp.eq.f32.partialorder %v575, 8.507059e+37
    %v577 = vand.u32 %v565, 2147483648
    %v578 = vor.u32 1.1754944e-38, %v577
    %v579 = vsel %vm576, %v578, %v574
    %v580 = vmul.f32 1.0, %v579
    %v581 = vtanh.pop %v561
    %v582 = vmul.f32 %v580, %v446
    %584 = vrot.lane.b32.xlu0 %v581, 64
    %v585 = vpop.permute.xlu0 %584
    %v587 = vmul.f32 %v580, %v585
    %589 = vrot.lane.b32.xlu0 %v587, 32
    %v590 = vpop.permute.xlu0 %589
    %v592 = vadd.f32 %v582, %v590
    %v593 = vtanh.pop %v592
    %595 = vrot.lane.b32.xlu0 %v593, 64
    %v596 = vpop.permute.xlu0 %595
    %v598 = vmul.f32 %v580, %v596
    %600 = vrot.lane.b32.xlu0 %v540, 32
    %v601 = vpop.permute.xlu0 %600
    %v602 = vsel %vm104, %v601, 0
    %604 = vmatpush.msra.mxu0 0.0
    %605 = vmatpush.msra.mxu0 0.0
    %606 = vmatpush.msra.mxu0 0.0
    %607 = vmatpush.msra.mxu0 0.0
    %608 = vmatpush.msra.mxu0 0.0
    %609 = vmatpush.msra.mxu0 0.0
    %610 = vmatpush.msra.mxu0 0.0
    %611 = vmatpush.msra.mxu0 0.0
    %612 = vmatpush.msra.mxu0 0.0
    %613 = vmatpush.msra.mxu0 0.0
    %614 = vmatpush.msra.mxu0 0.0
    %615 = vmatpush.msra.mxu0 0.0
    %616 = vmatpush.msra.mxu0 %v49
    %617 = vmatpush.msra.mxu0 %v48
    %618 = vmatpush.msra.mxu0 %v47
    %619 = vmatpush.msra.mxu0 %v46
    %620 = vmatmul.f32.gmra.mxu0 %v602
    %v621 = vpop.f32.mrf.mxu0
    %v622 = vadd.f32 0.0, %v621
    %623 = vdwg.mxu0
    %625 = vrot.lane.b32.xlu0 %v598, 32
    %v626 = vpop.permute.xlu0 %625
    %v627 = vsel %vm104, %v626, 0
    %629 = vmatpush.msra.mxu0 0.0
    %630 = vmatpush.msra.mxu0 0.0
    %631 = vmatpush.msra.mxu0 0.0
    %632 = vmatpush.msra.mxu0 0.0
    %633 = vmatpush.msra.mxu0 0.0
    %634 = vmatpush.msra.mxu0 0.0
    %635 = vmatpush.msra.mxu0 0.0
    %636 = vmatpush.msra.mxu0 0.0
    %637 = vmatpush.msra.mxu0 0.0
    %638 = vmatpush.msra.mxu0 0.0
    %639 = vmatpush.msra.mxu0 0.0
    %640 = vmatpush.msra.mxu0 0.0
    %641 = vmatpush.msra.mxu0 %v41
    %642 = vmatpush.msra.mxu0 %v40
    %643 = vmatpush.msra.mxu0 %v39
    %644 = vmatpush.msra.mxu0 %v38
    %645 = vmatmul.f32.gmra.mxu0 %v627
    %v646 = vpop.f32.mrf.mxu0
    %v647 = vadd.f32 %v622, %v646
    %648 = vdwg.mxu0
    %v649 = vadd.f32 %v647, %v53
    %v650 = vxor.u32 %v649, 2147483648
    %v651 = vmul.f32 %v650, 1.442695
    %v652 = vpow.pop %v651
    %v653 = vadd.f32 %v652, 1.0
    %v654 = vrcp.pop %v653
    %v655 = vmul.f32 %v653, %v654
    %v656 = vsub.f32 1.0, %v655
    %v657 = vmul.f32 %v654, %v656
    %v658 = vadd.f32 %v654, %v657
    %vm659 = vweird.f32 %v653
    %vm660 = vweird.f32 %v654
    %vm661 = vmor %vm659, %vm660
    %v662 = vsel %vm661, %v654, %v658
    %v663 = vand.u32 2147483647, %v653
    %vm664 = vcmp.eq.f32.partialorder %v663, 8.507059e+37
    %v665 = vand.u32 %v653, 2147483648
    %v666 = vor.u32 1.1754944e-38, %v665
    %v667 = vsel %vm664, %v666, %v662
    %v668 = vmul.f32 1.0, %v667
    %v669 = vtanh.pop %v649
    %v670 = vmul.f32 %v668, %v534
    %672 = vrot.lane.b32.xlu0 %v669, 64
    %v673 = vpop.permute.xlu0 %672
    %v675 = vmul.f32 %v668, %v673
    %677 = vrot.lane.b32.xlu0 %v675, 32
    %v678 = vpop.permute.xlu0 %677
    %v680 = vadd.f32 %v670, %v678
    %v681 = vtanh.pop %v680
    %683 = vrot.lane.b32.xlu0 %v681, 64
    %v684 = vpop.permute.xlu0 %683
    %v686 = vmul.f32 %v668, %v684
    %v687 = vld [vmem:[%s7] sm:$0xff]
    %689 = vrot.lane.b32.xlu0 %v687, 96
    %v690 = vpop.permute.xlu0 %689
    %v692 = vmul.f32 %v686, %v690
    %v693 = vld [vmem:[%s8] sm:$0xff]
    %v694 = vld [vmem:[%s8 + $0x8] sm:$0xff]
    %v695 = vld [vmem:[%s8 + $0x10] sm:$0xff]
    %v696 = vld [vmem:[%s8 + $0x18] sm:$0xff]
    %v697 = vld [vmem:[%s9] sm:$0x1]
    %v699 = vperm.slane %v697, 0
    %702 = vrot.lane.b32.xlu0 %v692, 32
    %v703 = vpop.permute.xlu0 %702
    %v704 = vsel %vm104, %v703, 0
    %706 = vmatpush.msra.mxu0 0.0
    %707 = vmatpush.msra.mxu0 0.0
    %708 = vmatpush.msra.mxu0 0.0
    %709 = vmatpush.msra.mxu0 0.0
    %710 = vmatpush.msra.mxu0 0.0
    %711 = vmatpush.msra.mxu0 0.0
    %712 = vmatpush.msra.mxu0 0.0
    %713 = vmatpush.msra.mxu0 0.0
    %714 = vmatpush.msra.mxu0 0.0
    %715 = vmatpush.msra.mxu0 0.0
    %716 = vmatpush.msra.mxu0 0.0
    %717 = vmatpush.msra.mxu0 0.0
    %718 = vmatpush.msra.mxu0 %v696
    %719 = vmatpush.msra.mxu0 %v695
    %720 = vmatpush.msra.mxu0 %v694
    %721 = vmatpush.msra.mxu0 %v693
    %722 = vmatmul.f32.gmra.mxu0 %v704
    %v723 = vpop.f32.mrf.mxu0
    %v724 = vadd.f32 %v699, %v723
    %725 = vdwg.mxu0
    %vm726 = vcmask 80896
    %727 = vst.msk [vmem:[#allocation2] sm:$0xff] %vm726, %v724
    // Predicated region
    $region42: #{stacked_lstm_one_forward.1} parent=1 // pred_check
      _
    $region43: #{stacked_lstm_one_forward.1} parent=1 // pred_check_branch
      %729 = sbr.rel (0) target = $region45
    $region44: #{stacked_lstm_one_forward.1} parent=1 // pred_region
      %731 = vsyncadd [#allocation3], 0
      %s733 = sshll.u32 [#allocation2], 4
      %s734 = int_to_ptr.vmem [resolvable:$true] %s733
      %s735 = sshll.u32 %s10, 4
      %s736 = int_to_ptr.hbm [resolvable:$true] %s735
      %738 = dma.vmem_to_hbm [thread:$0]  %s734, 128, %s736, [#allocation3]
    $region45: #{stacked_lstm_one_forward.1} parent=1 // pred_fallthru
      _
    // Predicated region
    $region46: #{stacked_lstm_one_forward.1} parent=1 // pred_check
      _
    $region47: #{stacked_lstm_one_forward.1} parent=1 // pred_check_branch
      %740 = sbr.rel (0) target = $region49
    $region48: #{stacked_lstm_one_forward.1} parent=1 // pred_region
      %742 = dma.done [#allocation3], 128
    $region49: #{stacked_lstm_one_forward.1} parent=1 // pred_fallthru
      _
    %743 = vsyncpa [#allocation3], 1

</llo_original>
